<compile_context>
chip_gen: v7x
topology: tpu7x:2x2x1
jax: 0.10.0
libtpu: 0.0.40
codegen_flags: <defaults>
</compile_context>

<pallas_src>
import functools

import jax
import jax.numpy as jnp
from jax.experimental import pallas as pl
from jax.experimental.pallas import tpu as pltpu

BN_EPS = 1e-5


# --------------------------------- kernel -------------------------------------------

def _gnn_encoder_kernel(num_layers, tm, n_nodes,
                        a_ref, x_ref, w_ref, b_ref, p_ref,
                        o_ref, h_ref):
    """Grid = (layer l, node-row-block i), both axes serial ("arbitrary").

    Per step: rows [i*tm, (i+1)*tm) of  H_l = ReLU(A @ H_{l-1} @ W_l + b_l)
    with BN + bias already folded into (W_l, b_l); dropout is identity in eval.
    H_{l-1}/H_l live in a double-buffered VMEM scratch h_ref ([2*N, Fp]).
    On the last layer this row block's global_mean_pool contribution is
    accumulated into the resident output block o_ref ([G, Fp])."""
    l = pl.program_id(0)
    i = pl.program_id(1)
    last = num_layers - 1

    # One-time init: zero the pooled-output accumulator and stage the padded
    # node features into the source slot (slot 1) used by layer 0.
    @pl.when((l == 0) & (i == 0))
    def _():
        o_ref[...] = jnp.zeros_like(o_ref)
        h_ref[pl.ds(n_nodes, n_nodes), :] = x_ref[...]

    src = (l + 1) % 2                                   # slot holding H_{l-1}
    dst = l % 2                                         # slot receiving H_l
    src_off = pl.multiple_of(src * n_nodes, 8)
    dst_off = pl.multiple_of(dst * n_nodes + i * tm, 8)

    h_prev = h_ref[pl.ds(src_off, n_nodes), :].astype(jnp.bfloat16)     # [N, Fp]

    # GCN layer, (A @ H) @ W ordering (flip to A @ (H @ W) for wide->narrow layers).
    ah = jnp.dot(a_ref[...], h_prev, preferred_element_type=jnp.float32)   # [tm, Fp]
    h_new = jnp.dot(ah, w_ref[0], preferred_element_type=jnp.float32) + b_ref[0]
    h_new = jnp.maximum(h_new, 0.0)          # ReLU; dropout = identity (eval)

    h_ref[pl.ds(dst_off, tm), :] = h_new

    # Fused global_mean_pool: contract this block's node rows against P^T rows.
    @pl.when(l == last)
    def _():
        o_ref[...] += jax.lax.dot_general(
            p_ref[...], h_new,                          # [tm, G] x [tm, Fp]
            (((0,), (0,)), ((), ())),                   # contract node-row dim
            preferred_element_type=jnp.float32)         # -> [G, Fp]


# --------------------------------- wrapper ------------------------------------------

def _round_up(v, m):
    return ((v + m - 1) // m) * m


def _fold_bn(w, b, gamma, beta, mean, var, eps=BN_EPS):
    """Fold eval-mode BatchNorm1d (running stats) and conv bias into (W, b)."""
    scale = gamma * jax.lax.rsqrt(var + eps)
    return w * scale[None, :], (b - mean) * scale + beta


def gnn_encoder_forward(a_norm, x, layer_params, pool_mat, *, row_block=16):
    """layer_params: list of (w, b, gamma, beta, running_mean, running_var)."""
    n, in_dim = x.shape
    hidden = layer_params[-1][0].shape[1]
    num_layers = len(layer_params)
    num_graphs = pool_mat.shape[0]

    assert n % row_block == 0 and row_block % 16 == 0, \
        "row_block must divide N and be a multiple of 16 (bf16-packed A tiles)"

    # Lane-dense padded feature width (covers both input_dim and hidden).
    f_pad = _round_up(max(in_dim, hidden, 128), 128)

    # Fold BN, zero-pad, and stack per-layer params into two consolidated operands.
    w_all = jnp.zeros((num_layers, f_pad, f_pad), jnp.float32)
    b_all = jnp.zeros((num_layers, 1, f_pad), jnp.float32)
    for l, (w, b, gamma, beta, mean, var) in enumerate(layer_params):
        wf, bf = _fold_bn(w, b, gamma, beta, mean, var)
        w_all = w_all.at[l, : wf.shape[0], : wf.shape[1]].set(wf)
        b_all = b_all.at[l, 0, : bf.shape[0]].set(bf)

    x_pad = jnp.zeros((n, f_pad), jnp.float32).at[:, :in_dim].set(x.astype(jnp.float32))
    a_bf16 = a_norm.astype(jnp.bfloat16)          # memory-bound N^2 operand in bf16
    pool_t = pool_mat.T.astype(jnp.float32)       # [N, G]

    grid = (num_layers, n // row_block)

    flops = num_layers * (2 * n * n * f_pad + 2 * n * f_pad * f_pad) \
        + 2 * n * num_graphs * f_pad
    bytes_accessed = (num_layers * n * n * 2            # bf16 A re-read per layer
                      + n * f_pad * 4                   # padded X
                      + num_layers * f_pad * (f_pad + 1) * 4   # folded W + b
                      + n * num_graphs * 4              # pool matrix
                      + num_graphs * f_pad * 4)         # output

    out_pad = pl.pallas_call(
        functools.partial(_gnn_encoder_kernel, num_layers, row_block, n),
        out_shape=jax.ShapeDtypeStruct((num_graphs, f_pad), jnp.float32),
        grid_spec=pltpu.PrefetchScalarGridSpec(
            num_scalar_prefetch=0,
            grid=grid,
            in_specs=[
                pl.BlockSpec((row_block, n), lambda l, i: (i, 0)),           # A rows
                pl.BlockSpec((n, f_pad), lambda l, i: (0, 0)),               # padded X
                pl.BlockSpec((1, f_pad, f_pad), lambda l, i: (l, 0, 0)),     # W_l (BN folded)
                pl.BlockSpec((1, 1, f_pad), lambda l, i: (l, 0, 0)),         # b_l (BN folded)
                pl.BlockSpec((row_block, num_graphs), lambda l, i: (i, 0)),  # P^T rows
            ],
            out_specs=pl.BlockSpec((num_graphs, f_pad), lambda l, i: (0, 0)),
            scratch_shapes=[pltpu.VMEM((2 * n, f_pad), jnp.float32)],        # H double buffer
        ),
        compiler_params=pltpu.CompilerParams(
            # Both axes must stay serial: layer l+1 reads the full H_l scratch and
            # the pooled output accumulates across row blocks (a megacore split of
            # either axis would break the per-core VMEM scratch/accumulator).
            # TODO(synk): for v7x dual-TC, split layers into separate calls and
            # shard the row axis "parallel" with a cross-core pooled reduce.
            dimension_semantics=("arbitrary", "arbitrary"),
        ),
        cost_estimate=pl.CostEstimate(flops=flops, transcendentals=0,
                                      bytes_accessed=bytes_accessed),
    )(a_bf16, x_pad, w_all, b_all, pool_t)

    return out_pad[:, :hidden]


# ----------------------------- graph glue (plain JAX) --------------------------------

def build_norm_adj(senders, receivers, num_nodes):
    """Dense D^-1/2 (A + I) D^-1/2 (PyG gcn_norm semantics: scatter-add duplicate
    edges, add self-loops only where missing)."""
    a = jnp.zeros((num_nodes, num_nodes), jnp.float32)
    a = a.at[receivers, senders].add(1.0)                   # message flow src -> dst
    diag = jnp.diagonal(a)
    a = a + jnp.diag(jnp.where(diag == 0.0, 1.0, 0.0))      # add *remaining* self-loops
    deg = jnp.sum(a, axis=1)
    d_inv_sqrt = jnp.where(deg > 0.0, jax.lax.rsqrt(deg), 0.0)
    return a * d_inv_sqrt[:, None] * d_inv_sqrt[None, :]


def build_pool_matrix(batch, num_graphs):
    """[G, N] row-stochastic matrix implementing global_mean_pool."""
    onehot = (batch[None, :] == jnp.arange(num_graphs)[:, None]).astype(jnp.float32)
    counts = jnp.sum(onehot, axis=1, keepdims=True)
    return onehot / jnp.maximum(counts, 1.0)


def reference_forward(a_norm, x, layer_params, pool_mat):
    """Pure-JAX f32 reference of the eval-mode GNNEncoder forward."""
    h = x
    for (w, b, gamma, beta, mean, var) in layer_params:
        h = a_norm @ (h @ w) + b
        h = (h - mean) * jax.lax.rsqrt(var + BN_EPS) * gamma + beta
        h = jnp.maximum(h, 0.0)
    return pool_mat @ h


# ----------------------------------- main --------------------------------------------

if __name__ == "__main__":
    N, IN_DIM, HIDDEN, NUM_LAYERS, NUM_GRAPHS = 32, 8, 32, 2, 2
    NODES_PER_GRAPH = N // NUM_GRAPHS

    key = jax.random.PRNGKey(0)
    k_x, k_w, k_bn = jax.random.split(key, 3)

    # Node features (PyG `data.x`): [N, input_dim]
    x = jax.random.normal(k_x, (N, IN_DIM), dtype=jnp.float32)

    # Two ring graphs of 16 nodes each, edges stored in both directions.
    def ring_edges(offset, n):
        s = jnp.arange(n, dtype=jnp.int32) + offset
        d = (jnp.arange(n, dtype=jnp.int32) + 1) % n + offset
        return s, d

    s0, d0 = ring_edges(0, NODES_PER_GRAPH)
    s1, d1 = ring_edges(NODES_PER_GRAPH, NODES_PER_GRAPH)
    senders = jnp.concatenate([s0, d0, s1, d1])      # edge_index[0]
    receivers = jnp.concatenate([d0, s0, d1, s1])    # edge_index[1]
    batch = jnp.concatenate([jnp.zeros(NODES_PER_GRAPH, jnp.int32),
                             jnp.ones(NODES_PER_GRAPH, jnp.int32)])

    a_norm = build_norm_adj(senders, receivers, N)
    pool_mat = build_pool_matrix(batch, NUM_GRAPHS)

    # Parameters: glorot conv weights; BN stats made non-trivial so the eval-mode
    # BN-folding path is actually exercised (a trained model's running stats).
    def glorot(k, shape):
        lim = (6.0 / (shape[0] + shape[1])) ** 0.5
        return jax.random.uniform(k, shape, jnp.float32, -lim, lim)

    dims = [IN_DIM] + [HIDDEN] * NUM_LAYERS
    w_keys = jax.random.split(k_w, NUM_LAYERS)
    bn_keys = jax.random.split(k_bn, NUM_LAYERS)
    layer_params = []
    for l in range(NUM_LAYERS):
        kw1, kb1 = jax.random.split(w_keys[l])
        kg, kbt, km, kv = jax.random.split(bn_keys[l], 4)
        w = glorot(kw1, (dims[l], dims[l + 1]))
        b = 0.1 * jax.random.normal(kb1, (dims[l + 1],), jnp.float32)
        gamma = 1.0 + 0.1 * jax.random.normal(kg, (dims[l + 1],), jnp.float32)
        beta = 0.1 * jax.random.normal(kbt, (dims[l + 1],), jnp.float32)
        running_mean = 0.1 * jax.random.normal(km, (dims[l + 1],), jnp.float32)
        running_var = jax.random.uniform(kv, (dims[l + 1],), jnp.float32, 0.5, 1.5)
        layer_params.append((w, b, gamma, beta, running_mean, running_var))

    out = gnn_encoder_forward(a_norm, x, layer_params, pool_mat, row_block=16)
    out = jax.block_until_ready(out)
    assert out.shape == (NUM_GRAPHS, HIDDEN)

    # Validate against the pure-JAX f32 reference (loose tol: bf16 adjacency path).
    ref = reference_forward(a_norm, x, layer_params, pool_mat)
    assert jnp.allclose(out, ref, rtol=5e-2, atol=5e-2), (out, ref)

    print("KERNEL_OK")
</pallas_src>

<mosaic_0001>
module attributes {stable_mosaic.version = 11 : i64} {
  func.func @_gnn_encoder_kernel(%arg0: i32, %arg1: i32, %arg2: memref<16x32xbf16, #tpu.memory_space<vmem>>, %arg3: memref<32x128xf32, #tpu.memory_space<vmem>>, %arg4: memref<1x128x128xf32, #tpu.memory_space<vmem>>, %arg5: memref<1x1x128xf32, #tpu.memory_space<vmem>>, %arg6: memref<16x2xf32, #tpu.memory_space<vmem>>, %arg7: memref<2x128xf32, #tpu.memory_space<vmem>>, %arg8: memref<64x128xf32, #tpu.memory_space<vmem>>) attributes {dimension_semantics = [#tpu.dimension_semantics<arbitrary>, #tpu.dimension_semantics<arbitrary>], iteration_bounds = array<i64: 2, 2>, scalar_prefetch = 0 : i64, scratch_operands = 1 : i64, tpu.core_type = #tpu.core_type<tc>, window_params = [{transform_indices = @transform_0, window_bounds = array<i64: 16, 32>}, {pipeline_mode = #tpu.pipeline_mode<synchronous>, transform_indices = @transform_1, window_bounds = array<i64: 32, 128>}, {transform_indices = @transform_2, window_bounds = array<i64: 1, 128, 128>}, {transform_indices = @transform_3, window_bounds = array<i64: 1, 1, 128>}, {transform_indices = @transform_4, window_bounds = array<i64: 16, 2>}, {pipeline_mode = #tpu.pipeline_mode<synchronous>, transform_indices = @transform_5, window_bounds = array<i64: 2, 128>}]} {
    %c0_i32 = arith.constant 0 : i32
    %0 = arith.cmpi eq, %arg0, %c0_i32 : i32
    %c0_i32_0 = arith.constant 0 : i32
    %1 = arith.cmpi eq, %arg1, %c0_i32_0 : i32
    %2 = arith.andi %0, %1 : i1
    %3 = arith.extui %2 : i1 to i32
    %c0_i32_1 = arith.constant 0 : i32
    %4 = arith.cmpi ne, %3, %c0_i32_1 : i32
    scf.if %4 {
      %cst_27 = arith.constant 0.000000e+00 : f32
      %51 = vector.broadcast %cst_27 : f32 to vector<2x128xf32>
      %c0_28 = arith.constant 0 : index
      %c0_29 = arith.constant 0 : index
      %52 = vector.load %arg7[%c0_28, %c0_29] : memref<2x128xf32, #tpu.memory_space<vmem>>, vector<2x128xf32>
      tpu.vector_store %arg7[%c0_28, %c0_29], %51 {strides = array<i32>} : memref<2x128xf32, #tpu.memory_space<vmem>>, vector<2x128xf32>,
      %c0_30 = arith.constant 0 : index
      %c0_31 = arith.constant 0 : index
      %53 = vector.load %arg3[%c0_30, %c0_31] : memref<32x128xf32, #tpu.memory_space<vmem>>, vector<32x128xf32>
      %c32 = arith.constant 32 : index
      %c0_32 = arith.constant 0 : index
      %54 = vector.load %arg8[%c32, %c0_32] : memref<64x128xf32, #tpu.memory_space<vmem>>, vector<32x128xf32>
      tpu.vector_store %arg8[%c32, %c0_32], %53 {strides = array<i32>} : memref<64x128xf32, #tpu.memory_space<vmem>>, vector<32x128xf32>,
    } else {
    }
    %c1_i32 = arith.constant 1 : i32
    %5 = arith.addi %arg0, %c1_i32 : i32
    %c2_i32 = arith.constant 2 : i32
    %c0_i32_2 = arith.constant 0 : i32
    %6 = arith.cmpi eq, %c2_i32, %c0_i32_2 : i32
    %c1_i32_3 = arith.constant 1 : i32
    %7 = arith.select %6, %c1_i32_3, %c2_i32 : i32
    %8 = arith.remsi %5, %7 : i32
    %c0_i32_4 = arith.constant 0 : i32
    %9 = arith.cmpi ne, %8, %c0_i32_4 : i32
    %c0_i32_5 = arith.constant 0 : i32
    %10 = arith.cmpi slt, %8, %c0_i32_5 : i32
    %c0_i32_6 = arith.constant 0 : i32
    %11 = arith.cmpi slt, %7, %c0_i32_6 : i32
    %12 = arith.xori %10, %11 : i1
    %13 = arith.andi %12, %9 : i1
    %14 = arith.addi %8, %7 : i32
    %15 = arith.select %13, %14, %8 : i32
    %c2_i32_7 = arith.constant 2 : i32
    %c0_i32_8 = arith.constant 0 : i32
    %16 = arith.cmpi eq, %c2_i32_7, %c0_i32_8 : i32
    %c1_i32_9 = arith.constant 1 : i32
    %17 = arith.select %16, %c1_i32_9, %c2_i32_7 : i32
    %18 = arith.remsi %arg0, %17 : i32
    %c0_i32_10 = arith.constant 0 : i32
    %19 = arith.cmpi ne, %18, %c0_i32_10 : i32
    %c0_i32_11 = arith.constant 0 : i32
    %20 = arith.cmpi slt, %18, %c0_i32_11 : i32
    %c0_i32_12 = arith.constant 0 : i32
    %21 = arith.cmpi slt, %17, %c0_i32_12 : i32
    %22 = arith.xori %20, %21 : i1
    %23 = arith.andi %22, %19 : i1
    %24 = arith.addi %18, %17 : i32
    %25 = arith.select %23, %24, %18 : i32
    %c32_i32 = arith.constant 32 : i32
    %26 = arith.muli %15, %c32_i32 : i32
    %27 = tpu.assume_multiple %26, 8 : i32
    %c32_i32_13 = arith.constant 32 : i32
    %28 = arith.muli %25, %c32_i32_13 : i32
    %c16_i32 = arith.constant 16 : i32
    %29 = arith.muli %arg1, %c16_i32 : i32
    %30 = arith.addi %28, %29 : i32
    %31 = tpu.assume_multiple %30, 8 : i32
    %32 = arith.index_cast %27 : i32 to index
    %c0 = arith.constant 0 : index
    %33 = vector.load %arg8[%32, %c0] : memref<64x128xf32, #tpu.memory_space<vmem>>, vector<32x128xf32>
    %34 = arith.truncf %33 : vector<32x128xf32> to vector<32x128xbf16>
    %c0_14 = arith.constant 0 : index
    %c0_15 = arith.constant 0 : index
    %35 = vector.load %arg2[%c0_14, %c0_15] : memref<16x32xbf16, #tpu.memory_space<vmem>>, vector<16x32xbf16>
    %cst = arith.constant dense<0.000000e+00> : vector<16x128xf32>
    %36 = tpu.matmul %35, %34, %cst {dimension_numbers = #tpu.dot_dimension_numbers<[1], [0], [0], [1], [0, 0, 1, 1], [], []>} : vector<16x32xbf16>, vector<32x128xbf16>, vector<16x128xf32> -> vector<16x128xf32>
    %c0_16 = arith.constant 0 : index
    %c0_17 = arith.constant 0 : index
    %c0_18 = arith.constant 0 : index
    %37 = vector.load %arg4[%c0_16, %c0_17, %c0_18] : memref<1x128x128xf32, #tpu.memory_space<vmem>>, vector<1x128x128xf32>
    %38 = vector.shape_cast %37 : vector<1x128x128xf32> to vector<128x128xf32>
    %cst_19 = arith.constant dense<0.000000e+00> : vector<16x128xf32>
    %39 = tpu.matmul %36, %38, %cst_19 {dimension_numbers = #tpu.dot_dimension_numbers<[1], [0], [0], [1], [0, 0, 1, 1], [], []>} : vector<16x128xf32>, vector<128x128xf32>, vector<16x128xf32> -> vector<16x128xf32>
    %c0_20 = arith.constant 0 : index
    %c0_21 = arith.constant 0 : index
    %c0_22 = arith.constant 0 : index
    %40 = vector.load %arg5[%c0_20, %c0_21, %c0_22] : memref<1x1x128xf32, #tpu.memory_space<vmem>>, vector<1x1x128xf32>
    %41 = vector.shape_cast %40 : vector<1x1x128xf32> to vector<1x128xf32>
    %42 = vector.broadcast %41 : vector<1x128xf32> to vector<16x128xf32>
    %43 = arith.addf %39, %42 : vector<16x128xf32>
    %cst_23 = arith.constant 0.000000e+00 : f32
    %44 = vector.broadcast %cst_23 : f32 to vector<16x128xf32>
    %45 = arith.maximumf %43, %44 : vector<16x128xf32>
    %46 = arith.index_cast %31 : i32 to index
    %c0_24 = arith.constant 0 : index
    %47 = vector.load %arg8[%46, %c0_24] : memref<64x128xf32, #tpu.memory_space<vmem>>, vector<16x128xf32>
    tpu.vector_store %arg8[%46, %c0_24], %45 {strides = array<i32>} : memref<64x128xf32, #tpu.memory_space<vmem>>, vector<16x128xf32>,
    %c1_i32_25 = arith.constant 1 : i32
    %48 = arith.cmpi eq, %arg0, %c1_i32_25 : i32
    %49 = arith.extui %48 : i1 to i32
    %c0_i32_26 = arith.constant 0 : i32
    %50 = arith.cmpi ne, %49, %c0_i32_26 : i32
    scf.if %50 {
      %c0_27 = arith.constant 0 : index
      %c0_28 = arith.constant 0 : index
      %51 = vector.load %arg7[%c0_27, %c0_28] : memref<2x128xf32, #tpu.memory_space<vmem>>, vector<2x128xf32>
      %c0_29 = arith.constant 0 : index
      %c0_30 = arith.constant 0 : index
      %52 = vector.load %arg6[%c0_29, %c0_30] : memref<16x2xf32, #tpu.memory_space<vmem>>, vector<16x2xf32>
      %cst_31 = arith.constant dense<0.000000e+00> : vector<2x128xf32>
      %53 = tpu.matmul %52, %45, %cst_31 {dimension_numbers = #tpu.dot_dimension_numbers<[0], [0], [1], [1], [0, 1, 1, 1], [], []>} : vector<16x2xf32>, vector<16x128xf32>, vector<2x128xf32> -> vector<2x128xf32>
      %54 = arith.addf %51, %53 : vector<2x128xf32>
      %c0_32 = arith.constant 0 : index
      %c0_33 = arith.constant 0 : index
      %55 = vector.load %arg7[%c0_32, %c0_33] : memref<2x128xf32, #tpu.memory_space<vmem>>, vector<2x128xf32>
      tpu.vector_store %arg7[%c0_32, %c0_33], %54 {strides = array<i32>} : memref<2x128xf32, #tpu.memory_space<vmem>>, vector<2x128xf32>,
    } else {
    }
    return
  }
  func.func @transform_0(%arg0: i32, %arg1: i32) -> (i32, i32) {
    %c0_i32 = arith.constant 0 : i32
    %c0_i32_0 = arith.constant 0 : i32
    return %arg1, %c0_i32 : i32, i32
  }
  func.func @transform_1(%arg0: i32, %arg1: i32) -> (i32, i32) {
    %c0_i32 = arith.constant 0 : i32
    %c0_i32_0 = arith.constant 0 : i32
    %c0_i32_1 = arith.constant 0 : i32
    return %c0_i32, %c0_i32_0 : i32, i32
  }
  func.func @transform_2(%arg0: i32, %arg1: i32) -> (i32, i32, i32) {
    %c0_i32 = arith.constant 0 : i32
    %c0_i32_0 = arith.constant 0 : i32
    %c0_i32_1 = arith.constant 0 : i32
    return %arg0, %c0_i32, %c0_i32_0 : i32, i32, i32
  }
  func.func @transform_3(%arg0: i32, %arg1: i32) -> (i32, i32, i32) {
    %c0_i32 = arith.constant 0 : i32
    %c0_i32_0 = arith.constant 0 : i32
    %c0_i32_1 = arith.constant 0 : i32
    return %arg0, %c0_i32, %c0_i32_0 : i32, i32, i32
  }
  func.func @transform_4(%arg0: i32, %arg1: i32) -> (i32, i32) {
    %c0_i32 = arith.constant 0 : i32
    %c0_i32_0 = arith.constant 0 : i32
    return %arg1, %c0_i32 : i32, i32
  }
  func.func @transform_5(%arg0: i32, %arg1: i32) -> (i32, i32) {
    %c0_i32 = arith.constant 0 : i32
    %c0_i32_0 = arith.constant 0 : i32
    %c0_i32_1 = arith.constant 0 : i32
    return %c0_i32, %c0_i32_0 : i32, i32
  }
}

</mosaic_0001>

<llo_original>
// kernel: tpu_custom_call.1
$region0: #{tpu_custom_call.1}
  #allocation0 [shape = 'u32[]', space=smem, size = 0x4, offset = 0x4, fixed_abs, tag = 'smem constant byte address 0x4 - core index']
  #allocation1 [shape = 'u32[144,128]{1,0:T(1,128)}', space=vmem, size = 0x12000, scoped, tag = 'internal scratch']
  #allocation2 [shape = 'f32[64,128]{1,0:T(8,128)}', space=vmem, size = 0x8000, scoped, tag = 'scratch operand']
  %s0 = inlined_call_operand.hbm [shape: bf16[32,32], index: 0, kind: input, shape index: {}]
  %s1 = inlined_call_operand.vmem [shape: f32[32,128], index: 1, kind: input, shape index: {}]
  %s2 = inlined_call_operand.hbm [shape: f32[2,128,128], index: 2, kind: input, shape index: {}]
  %s3 = inlined_call_operand.vmem [shape: f32[2,1,128], index: 3, kind: input, shape index: {}]
  %s4 = inlined_call_operand.vmem [shape: f32[32,2], index: 4, kind: input, shape index: {}]
  %s5 = inlined_call_operand.hbm [shape: f32[2,128], index: 5, kind: output, shape index: {}]
  %s6 = sld [smem:[#allocation0]]
  $region69: #{tpu_custom_call.1} parent=0
    _
  %s8 = ssub.s32 1, %s6
  %s9 = scalar_select 0, %s8, %s6
  $region1: #{tpu_custom_call.1} parent=0
    #allocation3 [shape = 'u8[8192]{0}', space=vmem, size = 0x2000, scoped, tag = 'input window, operand 0']
    #allocation4 [shape = 's32[2]{0}', space=sflag, size = 0x8, scoped, tag = 'scoped memory for tpu_custom_call.1']
    #allocation5 [shape = 's32[2]{0}', space=sflag, size = 0x8, scoped, tag = 'scoped memory for tpu_custom_call.1']
    #allocation6 [shape = 'u8[131072]{0}', space=vmem, size = 0x20000, scoped, tag = 'input window, operand 2']
    #allocation7 [shape = 's32[2]{0}', space=sflag, size = 0x8, scoped, tag = 'scoped memory for tpu_custom_call.1']
    #allocation8 [shape = 'u8[1024]{0}', space=vmem, size = 0x400, scoped, tag = 'output window, operand 0, single buffered']
    %10 = vsyncpa [#allocation4], 0
    %s11 = scalar_lea.sflag [#allocation4], 1
    %12 = vsyncpa %s11, 0
    %13 = vsyncpa [#allocation7], 0
    %s14 = scalar_lea.sflag [#allocation7], 1
    %15 = vsyncpa %s14, 0
    %16 = vsyncpa [#allocation5], 0
    loop: start=0, step=1, limit=6
    $region2: #{tpu_custom_call.1} parent=1 // loop_pre_header
      _
    $region3: #{tpu_custom_call.1} parent=1 // loop_header
      %s18 = sphi 0, %s22
      %p19 = scmp.ge.s32.totalorder %s18, 6
      %s25 = sphi 0, %s37
      %s26 = sphi 0, %s33
      %s27 = sphi 0, %s25
      %s28 = sphi 0, %s26
      %s29 = sphi 0, %s27
      %s30 = sphi 0, %s28
      %s40 = sphi 0, %s42
      %s43 = sphi 0, %s40
      %s44 = sphi 0, %s43
      %s60 = sphi 0, %s44
      %s64 = sphi 0, %s64
      %s66 = sphi 0, %s64
      %s67 = sphi 0, %s66
      %s81 = sphi 0, %s67
      %s87 = sphi 0, %s89
      %s90 = sphi 0, %s87
      %s91 = sphi 0, %s90
      %s107 = sphi 0, %s91
      %s113 = sphi 0, %s115
      %s116 = sphi 0, %s113
      %s117 = sphi 0, %s116
      %s133 = sphi 0, %s117
      %s139 = sphi 0, %s141
      %s142 = sphi 0, %s139
      %s143 = sphi 0, %s142
      %s159 = sphi 0, %s143
      %s163 = sphi 0, %s163
      %s165 = sphi 0, %s163
      %s166 = sphi 0, %s165
      %s180 = sphi 0, %s166
    $region4: #{tpu_custom_call.1} parent=1 // loop_header_branch
      %21 = sbr.rel (%p19) target = $region8
    $region5: #{tpu_custom_call.1} parent=1 // loop_body
      %s23 = ssub.s32 %s18, 1
      %s24 = ssub.s32 %s18, 2
      %s31 = sadd.s32 1, %s26
      %p32 = scmp.ge.s32.totalorder %s31, 2
      %s33 = scalar_select %p32, 0, %s31
      %s34 = sadd.s32 1, %s25
      %s35 = scalar_select %p32, %s34, %s25
      %p36 = scmp.ge.s32.totalorder %s35, 2
      %s37 = scalar_select %p36, 0, %s35
      %s38 = ssub.s32 %s26, %s33
      %p39 = scmp.eq.s32.totalorder %s38, 0
      %s41 = sadd.s32 %s40, 1
      %s42 = scalar_select %p39, %s40, %s41
      %p45 = pneg %p39
      %p46 = scmp.eq.s32.totalorder %s18, 3
      %p47 = por %p45, %p46
      %p48 = scmp.ne.s32.totalorder %s40, %s43
      %p49 = scmp.eq.s32.totalorder %s18, 0
      %p50 = por %p48, %p49
      %p51 = scmp.ne.s32.totalorder %s40, %s43
      %p52 = scmp.eq.s32.totalorder %s23, 3
      %p53 = por %p51, %p52
      %p54 = scmp.ne.s32.totalorder %s43, %s44
      %p55 = scmp.eq.s32.totalorder %s23, 0
      %p56 = por %p54, %p55
      %p57 = scmp.ne.s32.totalorder %s43, %s44
      %p58 = scmp.eq.s32.totalorder %s24, 3
      %p59 = por %p57, %p58
      %p61 = scmp.ne.s32.totalorder %s44, %s60
      %p62 = scmp.eq.s32.totalorder %s24, 0
      %p63 = por %p61, %p62
      %s65 = sadd.s32 %s64, 1
      %p68 = scmp.eq.s32.totalorder %s18, 3
      %p69 = scmp.ne.s32.totalorder %s64, %s66
      %p70 = scmp.eq.s32.totalorder %s18, 0
      %p71 = por %p69, %p70
      %p72 = scmp.ne.s32.totalorder %s64, %s66
      %p73 = scmp.eq.s32.totalorder %s23, 3
      %p74 = por %p72, %p73
      %p75 = scmp.ne.s32.totalorder %s66, %s67
      %p76 = scmp.eq.s32.totalorder %s23, 0
      %p77 = por %p75, %p76
      %p78 = scmp.ne.s32.totalorder %s66, %s67
      %p79 = scmp.eq.s32.totalorder %s24, 3
      %p80 = por %p78, %p79
      %p82 = scmp.ne.s32.totalorder %s67, %s81
      %p83 = scmp.eq.s32.totalorder %s24, 0
      %p84 = por %p82, %p83
      %s85 = ssub.s32 %s25, %s37
      %p86 = scmp.eq.s32.totalorder %s85, 0
      %s88 = sadd.s32 %s87, 1
      %s89 = scalar_select %p86, %s87, %s88
      %p92 = pneg %p86
      %p93 = scmp.eq.s32.totalorder %s18, 3
      %p94 = por %p92, %p93
      %p95 = scmp.ne.s32.totalorder %s87, %s90
      %p96 = scmp.eq.s32.totalorder %s18, 0
      %p97 = por %p95, %p96
      %p98 = scmp.ne.s32.totalorder %s87, %s90
      %p99 = scmp.eq.s32.totalorder %s23, 3
      %p100 = por %p98, %p99
      %p101 = scmp.ne.s32.totalorder %s90, %s91
      %p102 = scmp.eq.s32.totalorder %s23, 0
      %p103 = por %p101, %p102
      %p104 = scmp.ne.s32.totalorder %s90, %s91
      %p105 = scmp.eq.s32.totalorder %s24, 3
      %p106 = por %p104, %p105
      %p108 = scmp.ne.s32.totalorder %s91, %s107
      %p109 = scmp.eq.s32.totalorder %s24, 0
      %p110 = por %p108, %p109
      %s111 = ssub.s32 %s25, %s37
      %p112 = scmp.eq.s32.totalorder %s111, 0
      %s114 = sadd.s32 %s113, 1
      %s115 = scalar_select %p112, %s113, %s114
      %p118 = pneg %p112
      %p119 = scmp.eq.s32.totalorder %s18, 3
      %p120 = por %p118, %p119
      %p121 = scmp.ne.s32.totalorder %s113, %s116
      %p122 = scmp.eq.s32.totalorder %s18, 0
      %p123 = por %p121, %p122
      %p124 = scmp.ne.s32.totalorder %s113, %s116
      %p125 = scmp.eq.s32.totalorder %s23, 3
      %p126 = por %p124, %p125
      %p127 = scmp.ne.s32.totalorder %s116, %s117
      %p128 = scmp.eq.s32.totalorder %s23, 0
      %p129 = por %p127, %p128
      %p130 = scmp.ne.s32.totalorder %s116, %s117
      %p131 = scmp.eq.s32.totalorder %s24, 3
      %p132 = por %p130, %p131
      %p134 = scmp.ne.s32.totalorder %s117, %s133
      %p135 = scmp.eq.s32.totalorder %s24, 0
      %p136 = por %p134, %p135
      %s137 = ssub.s32 %s26, %s33
      %p138 = scmp.eq.s32.totalorder %s137, 0
      %s140 = sadd.s32 %s139, 1
      %s141 = scalar_select %p138, %s139, %s140
      %p144 = pneg %p138
      %p145 = scmp.eq.s32.totalorder %s18, 3
      %p146 = por %p144, %p145
      %p147 = scmp.ne.s32.totalorder %s139, %s142
      %p148 = scmp.eq.s32.totalorder %s18, 0
      %p149 = por %p147, %p148
      %p150 = scmp.ne.s32.totalorder %s139, %s142
      %p151 = scmp.eq.s32.totalorder %s23, 3
      %p152 = por %p150, %p151
      %p153 = scmp.ne.s32.totalorder %s142, %s143
      %p154 = scmp.eq.s32.totalorder %s23, 0
      %p155 = por %p153, %p154
      %p156 = scmp.ne.s32.totalorder %s142, %s143
      %p157 = scmp.eq.s32.totalorder %s24, 3
      %p158 = por %p156, %p157
      %p160 = scmp.ne.s32.totalorder %s143, %s159
      %p161 = scmp.eq.s32.totalorder %s24, 0
      %p162 = por %p160, %p161
      %s164 = sadd.s32 %s163, 1
      %p167 = scmp.eq.s32.totalorder %s18, 3
      %p168 = scmp.ne.s32.totalorder %s163, %s165
      %p169 = scmp.eq.s32.totalorder %s18, 0
      %p170 = por %p168, %p169
      %p171 = scmp.ne.s32.totalorder %s163, %s165
      %p172 = scmp.eq.s32.totalorder %s23, 3
      %p173 = por %p171, %p172
      %p174 = scmp.ne.s32.totalorder %s165, %s166
      %p175 = scmp.eq.s32.totalorder %s23, 0
      %p176 = por %p174, %p175
      %p177 = scmp.ne.s32.totalorder %s165, %s166
      %p178 = scmp.eq.s32.totalorder %s24, 3
      %p179 = por %p177, %p178
      %p181 = scmp.ne.s32.totalorder %s166, %s180
      %p182 = scmp.eq.s32.totalorder %s24, 0
      %p183 = por %p181, %p182
      %p184 = scmp.le.s32.totalorder 1, %s18
      %p185 = scmp.lt.s32.totalorder %s18, 5
      %p186 = pnand %p184, %p185
      %p187 = pneg %p186
      // Predicated region
      $region9: #{tpu_custom_call.1} parent=5 // pred_check
        _
      $region10: #{tpu_custom_call.1} parent=5 // pred_check_branch
        %189 = sbr.rel (%p186) target = $region12
      $region11: #{tpu_custom_call.1} parent=5 // pred_region
        %s190 = ssub.s32 %s18, 1
        // Predicated region
        $region13: #{tpu_custom_call.1} parent=11 // pred_check
          %p191 = pneg %p77
        $region14: #{tpu_custom_call.1} parent=11 // pred_check_branch
          %193 = sbr.rel (%p191) target = $region16
        $region15: #{tpu_custom_call.1} parent=11 // pred_region
          _
        $region16: #{tpu_custom_call.1} parent=11 // pred_fallthru
          _
      $region12: #{tpu_custom_call.1} parent=5 // pred_fallthru
        _
      %p194 = scmp.lt.s32.totalorder %s18, 4
      // Predicated region
      $region17: #{tpu_custom_call.1} parent=5 // pred_check
        %p195 = pneg %p194
      $region18: #{tpu_custom_call.1} parent=5 // pred_check_branch
        %197 = sbr.rel (%p195) target = $region20
      $region19: #{tpu_custom_call.1} parent=5 // pred_region
        // Predicated region
        $region21: #{tpu_custom_call.1} parent=19 // pred_check
          %p198 = pneg %p50
        $region22: #{tpu_custom_call.1} parent=19 // pred_check_branch
          %200 = sbr.rel (%p198) target = $region24
        $region23: #{tpu_custom_call.1} parent=19 // pred_region
          %s201 = sand.u32 %s40, 1
          %s202 = scalar_lea.sflag [#allocation4], %s201
          %s203 = sand.u32 %s40, 1
          %s204 = smul.addr %s203, 8
          %s205 = scalar_lea.vmem [#allocation3], %s204
          %s206 = smul.u32 2, %s26
          %s208 = ssub.s32 128, 128
          %209 = vsyncadd %s202, %s208
          %s210 = smul.addr %s206, 64
          %s211 = scalar_lea.hbm %s0, %s210
          %s212 = sshll.u32 %s205, 4
          %s213 = int_to_ptr.vmem [resolvable:$true] %s212
          %218 = dma.hbm_to_vmem [thread:$0]  %s211, 128, %s213, %s202, 64, 64, 4
        $region24: #{tpu_custom_call.1} parent=19 // pred_fallthru
          _
        // Predicated region
        $region25: #{tpu_custom_call.1} parent=19 // pred_check
          %p219 = pneg %p97
        $region26: #{tpu_custom_call.1} parent=19 // pred_check_branch
          %221 = sbr.rel (%p219) target = $region28
        $region27: #{tpu_custom_call.1} parent=19 // pred_region
          %s222 = sand.u32 %s87, 1
          %s223 = scalar_lea.sflag [#allocation7], %s222
          %s224 = sand.u32 %s87, 1
          %s225 = smul.addr %s224, 128
          %s226 = scalar_lea.vmem [#allocation6], %s225
          %s228 = ssub.s32 2048, 2048
          %229 = vsyncadd %s223, %s228
          %s230 = smul.addr %s25, 16
          %s231 = smul.addr %s230, 128
          %s232 = scalar_lea.hbm %s2, %s231
          %s233 = sshll.u32 %s226, 4
          %s234 = int_to_ptr.vmem [resolvable:$true] %s233
          %239 = dma.hbm_to_vmem [thread:$0]  %s232, 2048, %s234, %s223, 128, 128, 8
        $region28: #{tpu_custom_call.1} parent=19 // pred_fallthru
          _
        // Predicated region
        $region29: #{tpu_custom_call.1} parent=19 // pred_check
          %p240 = pneg %p123
        $region30: #{tpu_custom_call.1} parent=19 // pred_check_branch
          %242 = sbr.rel (%p240) target = $region32
        $region31: #{tpu_custom_call.1} parent=19 // pred_region
          %p243 = scmp.lt.s32.totalorder %s25, 1
          %s244 = scalar_select %p243, %s25, 1
          %s245 = scalar_lea.vmem %s3, %s244
        $region32: #{tpu_custom_call.1} parent=19 // pred_fallthru
          _
        // Predicated region
        $region33: #{tpu_custom_call.1} parent=19 // pred_check
          %p246 = pneg %p149
        $region34: #{tpu_custom_call.1} parent=19 // pred_check_branch
          %248 = sbr.rel (%p246) target = $region36
        $region35: #{tpu_custom_call.1} parent=19 // pred_region
          %s249 = smul.u32 2, %s26
          %p250 = scmp.lt.s32.totalorder %s249, 3
          %s251 = scalar_select %p250, %s249, 3
          %s252 = smul.addr %s251, 8
          %s253 = scalar_lea.vmem %s4, %s252
          %s254 = smul.u32 2, %s26
        $region36: #{tpu_custom_call.1} parent=19 // pred_fallthru
          _
      $region20: #{tpu_custom_call.1} parent=5 // pred_fallthru
        _
      %p255 = scmp.le.s32.totalorder 1, %s18
      %p256 = scmp.lt.s32.totalorder %s18, 5
      %p257 = pnand %p255, %p256
      %p258 = pneg %p257
      // Predicated region
      $region37: #{tpu_custom_call.1} parent=5 // pred_check
        _
      $region38: #{tpu_custom_call.1} parent=5 // pred_check_branch
        %260 = sbr.rel (%p257) target = $region40
      $region39: #{tpu_custom_call.1} parent=5 // pred_region
        %s261 = ssub.s32 %s18, 1
        %s262 = sand.u32 %s43, 1
        %s263 = scalar_lea.sflag [#allocation4], %s262
        %s264 = sand.u32 %s43, 1
        %s265 = smul.addr %s264, 8
        %s266 = scalar_lea.vmem [#allocation3], %s265
        // Predicated region
        $region41: #{tpu_custom_call.1} parent=39 // pred_check
          %p267 = pneg %p56
        $region42: #{tpu_custom_call.1} parent=39 // pred_check_branch
          %269 = sbr.rel (%p267) target = $region44
        $region43: #{tpu_custom_call.1} parent=39 // pred_region
          %270 = dma.done %s263, 128
        $region44: #{tpu_custom_call.1} parent=39 // pred_fallthru
          _
        %s271 = sand.u32 %s90, 1
        %s272 = scalar_lea.sflag [#allocation7], %s271
        %s273 = sand.u32 %s90, 1
        %s274 = smul.addr %s273, 128
        %s275 = scalar_lea.vmem [#allocation6], %s274
        // Predicated region
        $region45: #{tpu_custom_call.1} parent=39 // pred_check
          %p276 = pneg %p103
        $region46: #{tpu_custom_call.1} parent=39 // pred_check_branch
          %278 = sbr.rel (%p276) target = $region48
        $region47: #{tpu_custom_call.1} parent=39 // pred_region
          %279 = dma.done %s272, 2048
        $region48: #{tpu_custom_call.1} parent=39 // pred_fallthru
          _
        %s280 = sand.u32 %s43, 1
        %s281 = scalar_lea.sflag [#allocation4], %s280
        %s282 = sand.u32 %s43, 1
        %s283 = smul.addr %s282, 8
        %s284 = scalar_lea.vmem [#allocation3], %s283
        %p285 = pneg %p56
        %p286 = pneg %p53
        %p287 = pneg %p77
        %p288 = pneg %p74
        %s289 = sand.u32 %s90, 1
        %s290 = scalar_lea.sflag [#allocation7], %s289
        %s291 = sand.u32 %s90, 1
        %s292 = smul.addr %s291, 128
        %s293 = scalar_lea.vmem [#allocation6], %s292
        %p294 = pneg %p103
        %p295 = pneg %p100
        %p296 = scmp.lt.s32.totalorder %s27, 1
        %s297 = scalar_select %p296, %s27, 1
        %s298 = scalar_lea.vmem %s3, %s297
        %p299 = pneg %p129
        %p300 = pneg %p126
        %s301 = smul.u32 2, %s28
        %p302 = scmp.lt.s32.totalorder %s301, 3
        %s303 = scalar_select %p302, %s301, 3
        %s304 = smul.addr %s303, 8
        %s305 = scalar_lea.vmem %s4, %s304
        %p306 = pneg %p155
        %p307 = pneg %p152
        %p308 = pneg %p176
        %p309 = pneg %p173
        %s310 = smul.u32 2, %s28
        %p311 = scmp.lt.s32.totalorder %s27, 1
        %s312 = scalar_select %p311, %s27, 1
        %s313 = scalar_lea.vmem %s3, %s312
        %s314 = smul.u32 2, %s28
        %p315 = scmp.lt.s32.totalorder %s314, 3
        %s316 = scalar_select %p315, %s314, 3
        %s317 = smul.addr %s316, 8
        %s318 = scalar_lea.vmem %s4, %s317
        %s319 = smul.u32 2, %s28
        %p321 = scmp.eq.s32.totalorder %s27, 0
        %p322 = scmp.eq.s32.totalorder %s28, 0
        %p323 = pnand %p321, %p322
        %p324 = pneg %p323
        // Predicated region
        $region49: #{tpu_custom_call.1} parent=39 // pred_check
          _
        $region50: #{tpu_custom_call.1} parent=39 // pred_check_branch
          %326 = sbr.rel (%p323) target = $region52
        $region51: #{tpu_custom_call.1} parent=39 // pred_region
          %327 = vst [vmem:[#allocation8] sm:$0x3] 0.0
          %v328 = vld [vmem:[%s1] sm:$0xff]
          %v329 = vld [vmem:[%s1 + $0x8] sm:$0xff]
          %v330 = vld [vmem:[%s1 + $0x10] sm:$0xff]
          %v331 = vld [vmem:[%s1 + $0x18] sm:$0xff]
          %332 = vst [vmem:[#allocation2 + $0x20] sm:$0xff] %v328
          %333 = vst [vmem:[#allocation2 + $0x28] sm:$0xff] %v329
          %334 = vst [vmem:[#allocation2 + $0x30] sm:$0xff] %v330
          %335 = vst [vmem:[#allocation2 + $0x38] sm:$0xff] %v331
        $region52: #{tpu_custom_call.1} parent=39 // pred_fallthru
          _
        %s336 = sadd.s32 %s27, 1
        %p337 = scmp.lt.s32.totalorder %s336, 0
        %s338 = ssub.s32 0, %s336
        %s339 = scalar_select %p337, %s338, %s336
        %s340 = sand.u32 %s339, 1
        %s341 = ssub.s32 0, %s340
        %s342 = scalar_select %p337, %s341, %s340
        %p343 = scmp.ne.s32.totalorder %s342, 0
        %p344 = scmp.lt.s32.totalorder %s342, 0
        %p345 = pnand %p344, %p343
        %p346 = pneg %p345
        %s347 = sadd.s32 %s342, 2
        %s348 = scalar_select %p346, %s347, %s342
        %p349 = scmp.lt.s32.totalorder %s27, 0
        %s350 = ssub.s32 0, %s27
        %s351 = scalar_select %p349, %s350, %s27
        %s352 = sand.u32 %s351, 1
        %s353 = ssub.s32 0, %s352
        %s354 = scalar_select %p349, %s353, %s352
        %p355 = scmp.ne.s32.totalorder %s354, 0
        %p356 = scmp.lt.s32.totalorder %s354, 0
        %p357 = pnand %p356, %p355
        %p358 = pneg %p357
        %s359 = sadd.s32 %s354, 2
        %s360 = scalar_select %p358, %s359, %s354
        %s361 = smul.u32 %s348, 32
        %s362 = smul.u32 %s360, 32
        %s363 = smul.u32 %s28, 16
        %s364 = sadd.s32 %s362, %s363
        %s365 = scalar_lea.vmem [#allocation2], %s361
        %v366 = vld [vmem:[%s365] sm:$0xff]
        %v367 = vld [vmem:[%s365 + $0x8] sm:$0xff]
        %v368 = vld [vmem:[%s365 + $0x10] sm:$0xff]
        %v369 = vld [vmem:[%s365 + $0x18] sm:$0xff]
        %v370 = vpack.c.bf16 %v367, %v366
        %v371 = vpack.c.bf16 %v369, %v368
        %v372 = vld [vmem:[%s266] sm:$0xf]
        %v373 = vld [vmem:[%s266 + $0x4] sm:$0xf]
        %v376 = vunpack.c.l.b16 %v372
        %v377 = vunpack.c.l.b16 %v373
        %v378 = vpack.c.b16 %v377, %v376
        %vm379 = vcmask 261120
        %v381 = vsel %vm379, %v378, 0
        %383 = vmatprep.subr.bf16.mxu0 0
        %384 = vmatpush1.bf16.msra.mxu0 %v370
        %385 = vmatprep.subr.bf16.mxu0 0
        %386 = vmatpush1.bf16.msra.mxu0 %v371
        %387 = vmatprep.subr.bf16.mxu0 0
        %388 = vmatpush1.bf16.msra.mxu0 0
        %389 = vmatprep.subr.bf16.mxu0 0
        %390 = vmatpush1.bf16.msra.mxu0 0
        %391 = vmatprep.subr.bf16.mxu0 0
        %392 = vmatpush1.bf16.msra.mxu0 0
        %393 = vmatprep.subr.bf16.mxu0 0
        %394 = vmatpush1.bf16.msra.mxu0 0
        %395 = vmatprep.subr.bf16.mxu0 0
        %396 = vmatpush1.bf16.msra.mxu0 0
        %397 = vmatprep.subr.bf16.mxu0 0
        %398 = vmatpush1.bf16.msra.mxu0 0
        %399 = vmatprep.subr.bf16.mxu0 0
        %400 = vmatpush1.bf16.msra.mxu0 0
        %401 = vmatprep.subr.bf16.mxu0 0
        %402 = vmatpush1.bf16.msra.mxu0 0
        %403 = vmatprep.subr.bf16.mxu0 0
        %404 = vmatpush1.bf16.msra.mxu0 0
        %405 = vmatprep.subr.bf16.mxu0 0
        %406 = vmatpush1.bf16.msra.mxu0 0
        %407 = vmatprep.subr.bf16.mxu0 0
        %408 = vmatpush1.bf16.msra.mxu0 0
        %409 = vmatprep.subr.bf16.mxu0 0
        %410 = vmatpush1.bf16.msra.mxu0 0
        %411 = vmatprep.subr.bf16.mxu0 0
        %412 = vmatpush1.bf16.msra.mxu0 0
        %413 = vmatprep.subr.bf16.mxu0 0
        %414 = vmatpush1.bf16.msra.mxu0 0
        %415 = vmatprep.mubr.bf16.mxu0 0
        %416 = vmatmul.mubr.bf16.gmra.mrb[0].mxu0 %v381
        %v417 = vpop.f32.mrb[0].mxu0
        %v418 = vadd.f32 0.0, %v417
        %v419 = vpop.f32.mrb[0].mxu0
        %v420 = vpop.f32.mrb[0].mxu0
        %v421 = vadd.f32 0.0, %v420
        %v422 = vpop.f32.mrb[0].mxu0
        %423 = vdwg.mxu0
        %v424 = vld [vmem:[%s275] sm:$0xff]
        %v425 = vld [vmem:[%s275 + $0x8] sm:$0xff]
        %v426 = vld [vmem:[%s275 + $0x10] sm:$0xff]
        %v427 = vld [vmem:[%s275 + $0x18] sm:$0xff]
        %v428 = vld [vmem:[%s275 + $0x20] sm:$0xff]
        %v429 = vld [vmem:[%s275 + $0x28] sm:$0xff]
        %v430 = vld [vmem:[%s275 + $0x30] sm:$0xff]
        %v431 = vld [vmem:[%s275 + $0x38] sm:$0xff]
        %v432 = vld [vmem:[%s275 + $0x40] sm:$0xff]
        %v433 = vld [vmem:[%s275 + $0x48] sm:$0xff]
        %v434 = vld [vmem:[%s275 + $0x50] sm:$0xff]
        %v435 = vld [vmem:[%s275 + $0x58] sm:$0xff]
        %v436 = vld [vmem:[%s275 + $0x60] sm:$0xff]
        %v437 = vld [vmem:[%s275 + $0x68] sm:$0xff]
        %v438 = vld [vmem:[%s275 + $0x70] sm:$0xff]
        %v439 = vld [vmem:[%s275 + $0x78] sm:$0xff]
        %v440 = vld [vmem:[%s313] sm:$0x1]
        %v442 = vlaneseq
        %v443 = vshrl.u32 %v442, 7
        %v444 = vsub.s32 0, %v443
        %v445 = vrot.slane %v440, %v444
        %447 = vmatprep.subr.mxu0 0.0
        %448 = vmatpush1.msra.mxu0 %v424
        %449 = vmatprep.subr.mxu0 0.0
        %450 = vmatpush1.msra.mxu0 %v425
        %451 = vmatprep.subr.mxu0 0.0
        %452 = vmatpush1.msra.mxu0 %v426
        %453 = vmatprep.subr.mxu0 0.0
        %454 = vmatpush1.msra.mxu0 %v427
        %455 = vmatprep.subr.mxu0 0.0
        %456 = vmatpush1.msra.mxu0 %v428
        %457 = vmatprep.subr.mxu0 0.0
        %458 = vmatpush1.msra.mxu0 %v429
        %459 = vmatprep.subr.mxu0 0.0
        %460 = vmatpush1.msra.mxu0 %v430
        %461 = vmatprep.subr.mxu0 0.0
        %462 = vmatpush1.msra.mxu0 %v431
        %463 = vmatprep.subr.mxu0 0.0
        %464 = vmatpush1.msra.mxu0 %v432
        %465 = vmatprep.subr.mxu0 0.0
        %466 = vmatpush1.msra.mxu0 %v433
        %467 = vmatprep.subr.mxu0 0.0
        %468 = vmatpush1.msra.mxu0 %v434
        %469 = vmatprep.subr.mxu0 0.0
        %470 = vmatpush1.msra.mxu0 %v435
        %471 = vmatprep.subr.mxu0 0.0
        %472 = vmatpush1.msra.mxu0 %v436
        %473 = vmatprep.subr.mxu0 0.0
        %474 = vmatpush1.msra.mxu0 %v437
        %475 = vmatprep.subr.mxu0 0.0
        %476 = vmatpush1.msra.mxu0 %v438
        %477 = vmatprep.subr.mxu0 0.0
        %478 = vmatpush1.msra.mxu0 %v439
        %479 = vmatprep.subr.mxu0 0.0
        %480 = vmatpush1.msra.mxu0 0.0
        %481 = vmatprep.subr.mxu0 0.0
        %482 = vmatpush1.msra.mxu0 0.0
        %483 = vmatprep.subr.mxu0 0.0
        %484 = vmatpush1.msra.mxu0 0.0
        %485 = vmatprep.subr.mxu0 0.0
        %486 = vmatpush1.msra.mxu0 0.0
        %487 = vmatprep.subr.mxu0 0.0
        %488 = vmatpush1.msra.mxu0 0.0
        %489 = vmatprep.subr.mxu0 0.0
        %490 = vmatpush1.msra.mxu0 0.0
        %491 = vmatprep.subr.mxu0 0.0
        %492 = vmatpush1.msra.mxu0 0.0
        %493 = vmatprep.subr.mxu0 0.0
        %494 = vmatpush1.msra.mxu0 0.0
        %495 = vmatprep.subr.mxu0 0.0
        %496 = vmatpush1.msra.mxu0 0.0
        %497 = vmatprep.subr.mxu0 0.0
        %498 = vmatpush1.msra.mxu0 0.0
        %499 = vmatprep.subr.mxu0 0.0
        %500 = vmatpush1.msra.mxu0 0.0
        %501 = vmatprep.subr.mxu0 0.0
        %502 = vmatpush1.msra.mxu0 0.0
        %503 = vmatprep.subr.mxu0 0.0
        %504 = vmatpush1.msra.mxu0 0.0
        %505 = vmatprep.subr.mxu0 0.0
        %506 = vmatpush1.msra.mxu0 0.0
        %507 = vmatprep.subr.mxu0 0.0
        %508 = vmatpush1.msra.mxu0 0.0
        %509 = vmatprep.subr.mxu0 0.0
        %510 = vmatpush1.msra.mxu0 0.0
        %511 = vmatprep.mubr.f32.mxu0 0.0
        %512 = vmatmul.mubr.f32.gmra.mrb[0].mxu0 %v418
        %v513 = vpop.f32.mrb[0].mxu0
        %v514 = vadd.f32 %v445, %v513
        %v515 = vpop.f32.mrb[0].mxu0
        %516 = vmatprep.mubr.f32.mxu0 0.0
        %517 = vmatmul.mubr.f32.gmra.mrb[0].mxu0 %v421
        %v518 = vpop.f32.mrb[0].mxu0
        %v519 = vadd.f32 %v445, %v518
        %v520 = vpop.f32.mrb[0].mxu0
        %521 = vdwg.mxu0
        %v522 = vmax.f32 %v514, 0.0
        %v523 = vmax.f32 %v519, 0.0
        %s524 = scalar_lea.vmem [#allocation2], %s364
        %525 = vst [vmem:[%s524] sm:$0xff] %v522
        %526 = vst [vmem:[%s524 + $0x8] sm:$0xff] %v523
        %p527 = scmp.eq.s32.totalorder %s27, 1
        // Predicated region
        $region53: #{tpu_custom_call.1} parent=39 // pred_check
          %p528 = pneg %p527
        $region54: #{tpu_custom_call.1} parent=39 // pred_check_branch
          %530 = sbr.rel (%p528) target = $region56
        $region55: #{tpu_custom_call.1} parent=39 // pred_region
          %v531 = vld [vmem:[#allocation8] sm:$0x3]
          %v532 = vld [vmem:[%s318] sm:$0xff]
          %v533 = vld [vmem:[%s318 + $0x8] sm:$0xff]
          %534 = vxpose.xlu0.b32.start [1/16] %v532, 128
          %535 = vxpose.xlu0.b32.cont [2/16] %v533, 128
          %536 = vxpose.xlu0.b32.cont [3/16] 0.0, 128
          %537 = vxpose.xlu0.b32.cont [4/16] 0.0, 128
          %538 = vxpose.xlu0.b32.cont [5/16] 0.0, 128
          %539 = vxpose.xlu0.b32.cont [6/16] 0.0, 128
          %540 = vxpose.xlu0.b32.cont [7/16] 0.0, 128
          %541 = vxpose.xlu0.b32.cont [8/16] 0.0, 128
          %542 = vxpose.xlu0.b32.cont [9/16] 0.0, 128
          %543 = vxpose.xlu0.b32.cont [10/16] 0.0, 128
          %544 = vxpose.xlu0.b32.cont [11/16] 0.0, 128
          %545 = vxpose.xlu0.b32.cont [12/16] 0.0, 128
          %546 = vxpose.xlu0.b32.cont [13/16] 0.0, 128
          %547 = vxpose.xlu0.b32.cont [14/16] 0.0, 128
          %548 = vxpose.xlu0.b32.cont [15/16] 0.0, 128
          %549 = vxpose.xlu0.b32.end [16/16] 0.0, 128
          %v550 = vpop.trf.xlu0
          %v551 = vpop.trf.xlu0
          %v552 = vpop.trf.xlu0
          %v553 = vpop.trf.xlu0
          %v554 = vpop.trf.xlu0
          %v555 = vpop.trf.xlu0
          %v556 = vpop.trf.xlu0
          %v557 = vpop.trf.xlu0
          %v558 = vpop.trf.xlu0
          %v559 = vpop.trf.xlu0
          %v560 = vpop.trf.xlu0
          %v561 = vpop.trf.xlu0
          %v562 = vpop.trf.xlu0
          %v563 = vpop.trf.xlu0
          %v564 = vpop.trf.xlu0
          %v565 = vpop.trf.xlu0
          %vm566 = vcmask 130048
          %v568 = vsel %vm566, %v550, 0
          %570 = vmatprep.subr.mxu0 0.0
          %571 = vmatpush1.msra.mxu0 %v522
          %572 = vmatprep.subr.mxu0 0.0
          %573 = vmatpush1.msra.mxu0 %v523
          %574 = vmatprep.subr.mxu0 0.0
          %575 = vmatpush1.msra.mxu0 0.0
          %576 = vmatprep.subr.mxu0 0.0
          %577 = vmatpush1.msra.mxu0 0.0
          %578 = vmatprep.subr.mxu0 0.0
          %579 = vmatpush1.msra.mxu0 0.0
          %580 = vmatprep.subr.mxu0 0.0
          %581 = vmatpush1.msra.mxu0 0.0
          %582 = vmatprep.subr.mxu0 0.0
          %583 = vmatpush1.msra.mxu0 0.0
          %584 = vmatprep.subr.mxu0 0.0
          %585 = vmatpush1.msra.mxu0 0.0
          %586 = vmatprep.subr.mxu0 0.0
          %587 = vmatpush1.msra.mxu0 0.0
          %588 = vmatprep.subr.mxu0 0.0
          %589 = vmatpush1.msra.mxu0 0.0
          %590 = vmatprep.subr.mxu0 0.0
          %591 = vmatpush1.msra.mxu0 0.0
          %592 = vmatprep.subr.mxu0 0.0
          %593 = vmatpush1.msra.mxu0 0.0
          %594 = vmatprep.subr.mxu0 0.0
          %595 = vmatpush1.msra.mxu0 0.0
          %596 = vmatprep.subr.mxu0 0.0
          %597 = vmatpush1.msra.mxu0 0.0
          %598 = vmatprep.subr.mxu0 0.0
          %599 = vmatpush1.msra.mxu0 0.0
          %600 = vmatprep.subr.mxu0 0.0
          %601 = vmatpush1.msra.mxu0 0.0
          %602 = vmatprep.subr.mxu0 0.0
          %603 = vmatpush1.msra.mxu0 0.0
          %604 = vmatprep.subr.mxu0 0.0
          %605 = vmatpush1.msra.mxu0 0.0
          %606 = vmatprep.subr.mxu0 0.0
          %607 = vmatpush1.msra.mxu0 0.0
          %608 = vmatprep.subr.mxu0 0.0
          %609 = vmatpush1.msra.mxu0 0.0
          %610 = vmatprep.subr.mxu0 0.0
          %611 = vmatpush1.msra.mxu0 0.0
          %612 = vmatprep.subr.mxu0 0.0
          %613 = vmatpush1.msra.mxu0 0.0
          %614 = vmatprep.subr.mxu0 0.0
          %615 = vmatpush1.msra.mxu0 0.0
          %616 = vmatprep.subr.mxu0 0.0
          %617 = vmatpush1.msra.mxu0 0.0
          %618 = vmatprep.subr.mxu0 0.0
          %619 = vmatpush1.msra.mxu0 0.0
          %620 = vmatprep.subr.mxu0 0.0
          %621 = vmatpush1.msra.mxu0 0.0
          %622 = vmatprep.subr.mxu0 0.0
          %623 = vmatpush1.msra.mxu0 0.0
          %624 = vmatprep.subr.mxu0 0.0
          %625 = vmatpush1.msra.mxu0 0.0
          %626 = vmatprep.subr.mxu0 0.0
          %627 = vmatpush1.msra.mxu0 0.0
          %628 = vmatprep.subr.mxu0 0.0
          %629 = vmatpush1.msra.mxu0 0.0
          %630 = vmatprep.subr.mxu0 0.0
          %631 = vmatpush1.msra.mxu0 0.0
          %632 = vmatprep.subr.mxu0 0.0
          %633 = vmatpush1.msra.mxu0 0.0
          %634 = vmatprep.mubr.f32.mxu0 0.0
          %635 = vmatmul.mubr.f32.gmra.mrb[0].mxu0 %v568
          %v636 = vpop.f32.mrb[0].mxu0
          %v637 = vadd.f32 0.0, %v636
          %v638 = vpop.f32.mrb[0].mxu0
          %639 = vdwg.mxu0
          %v640 = vadd.f32 %v531, %v637
          %641 = vst [vmem:[#allocation8] sm:$0x3] %v640
        $region56: #{tpu_custom_call.1} parent=39 // pred_fallthru
          _
        // Predicated region
        $region57: #{tpu_custom_call.1} parent=39 // pred_check
          %p642 = pneg %p173
        $region58: #{tpu_custom_call.1} parent=39 // pred_check_branch
          %644 = sbr.rel (%p642) target = $region60
        $region59: #{tpu_custom_call.1} parent=39 // pred_region
          %s646 = ssub.s32 32, 32
          %647 = vsyncadd [#allocation5], %s646
          %s649 = sshll.u32 [#allocation8], 4
          %s650 = int_to_ptr.vmem [resolvable:$true] %s649
          %652 = dma.vmem_to_hbm [thread:$0]  %s650, 32, %s5, [#allocation5]
        $region60: #{tpu_custom_call.1} parent=39 // pred_fallthru
          _
        // Predicated region
        $region61: #{tpu_custom_call.1} parent=39 // pred_check
          %p653 = pneg %p173
        $region62: #{tpu_custom_call.1} parent=39 // pred_check_branch
          %655 = sbr.rel (%p653) target = $region64
        $region63: #{tpu_custom_call.1} parent=39 // pred_region
          %656 = dma.done [#allocation5], 32
        $region64: #{tpu_custom_call.1} parent=39 // pred_fallthru
          _
      $region40: #{tpu_custom_call.1} parent=5 // pred_fallthru
        _
      %p657 = scmp.le.s32.totalorder 2, %s18
      // Predicated region
      $region65: #{tpu_custom_call.1} parent=5 // pred_check
        %p658 = pneg %p657
      $region66: #{tpu_custom_call.1} parent=5 // pred_check_branch
        %660 = sbr.rel (%p658) target = $region68
      $region67: #{tpu_custom_call.1} parent=5 // pred_region
        %s661 = ssub.s32 %s18, 2
      $region68: #{tpu_custom_call.1} parent=5 // pred_fallthru
        _
    $region6: #{tpu_custom_call.1} parent=1 // loop_footer
      %s22 = sadd.s32 1, %s18
    $region7: #{tpu_custom_call.1} parent=1 // loop_footer_branch
      %17 = sbr.rel target = $region3
    $region8: #{tpu_custom_call.1} parent=1 // loop_exit
      _
    %662 = vsyncpa [#allocation4], 1
    %s663 = scalar_lea.sflag [#allocation4], 1
    %664 = vsyncpa %s663, 1
    %665 = vsyncpa [#allocation7], 1
    %s666 = scalar_lea.sflag [#allocation7], 1
    %667 = vsyncpa %s666, 1
    %668 = vsyncpa [#allocation5], 1
    %s669 = scalar_lea.sflag [#allocation5], 1
    %670 = vsyncpa %s669, 1

</llo_original>
